<compile_context>
chip_gen: v7x
topology: tpu7x:2x2x1
jax: 0.10.0
libtpu: 0.0.40
codegen_flags: <defaults>
</compile_context>

<pallas_src>
import jax
import jax.numpy as jnp
from jax import lax
from jax.experimental import pallas as pl
from jax.experimental.pallas import tpu as pltpu


# Contract lhs dim 1 with rhs dim 0  (ordinary  A @ B).
_DN = (((1,), (0,)), ((), ()))
# Contract lhs dim 0 with rhs dim 0  (A^T @ B, no materialized transpose).
_DN_T = (((0,), (0,)), ((), ()))


def mlff_kernel(xT_ref,
                w1_ref, b1_ref,
                w2_ref, b2_ref,
                w3t_ref, b3_ref,
                energy_ref, forces_ref):
    xT = xT_ref[...]          # (9, TB)   batch on lanes
    w1 = w1_ref[...]          # (32, 9)
    b1 = b1_ref[...]          # (32, 1)
    w2 = w2_ref[...]          # (16, 32)
    b2 = b2_ref[...]          # (16, 1)
    w3t = w3t_ref[...]        # (16, 1)   == W3^T
    b3 = b3_ref[...]          # (1, 1)

    # ---- forward: energy = fc3(relu(fc2(relu(fc1(x))))) ----
    a1 = lax.dot_general(w1, xT, _DN, preferred_element_type=jnp.float32) + b1    # (32, TB)
    h1 = jnp.maximum(a1, 0.0)
    a2 = lax.dot_general(w2, h1, _DN, preferred_element_type=jnp.float32) + b2    # (16, TB)
    h2 = jnp.maximum(a2, 0.0)
    energy_ref[...] = (
        lax.dot_general(w3t, h2, _DN_T, preferred_element_type=jnp.float32) + b3  # (1, TB)
    )

    # ---- analytic backward: grad of energy.sum() w.r.t. x ----
    g2 = jnp.where(a2 > 0.0, w3t, 0.0)                                             # (16, TB)
    g1 = jnp.where(
        a1 > 0.0,
        lax.dot_general(w2, g2, _DN_T, preferred_element_type=jnp.float32),        # (32, TB)
        0.0,
    )
    grad_xT = lax.dot_general(w1, g1, _DN_T, preferred_element_type=jnp.float32)   # (9, TB)
    forces_ref[...] = -grad_xT


def _round_up(n, m):
    return ((n + m - 1) // m) * m


def init_params(key):
    """Deterministic init mimicking torch.nn.Linear defaults (uniform +-1/sqrt(fan_in))."""
    ks = jax.random.split(key, 6)

    def lin(kw, kb, out_f, in_f):
        bound = 1.0 / jnp.sqrt(jnp.float32(in_f))
        w = jax.random.uniform(kw, (out_f, in_f), jnp.float32, -bound, bound)
        b = jax.random.uniform(kb, (out_f,), jnp.float32, -bound, bound)
        return w, b

    w1, b1 = lin(ks[0], ks[1], 32, 9)
    w2, b2 = lin(ks[2], ks[3], 16, 32)
    w3, b3 = lin(ks[4], ks[5], 1, 16)
    return (w1, b1, w2, b2, w3, b3)


def toy_mlff_forward(x, z, params, *, max_tile_b=2048):
    # z (atomic numbers) is accepted for signature parity but unused, as in the
    # reference PyTorch forward.
    del z
    w1, b1, w2, b2, w3, b3 = params

    batch_size = x.shape[0] if x.ndim > 2 else 1
    x_flat = x.reshape(batch_size, -1).astype(jnp.float32)     # (B, 9)
    B, F = x_flat.shape

    # Lane axis tile: multiple of 128, capped for very small batches.
    tile_b = min(max_tile_b, _round_up(B, 128))
    b_pad = _round_up(B, tile_b)
    grid = (pl.cdiv(b_pad, tile_b),)

    # Transposed, batch-on-lanes input, zero-padded to the tile boundary.
    xT = jnp.zeros((F, b_pad), jnp.float32).at[:, :B].set(x_flat.T)

    resident = lambda shape: pl.BlockSpec(shape, lambda i: (0, 0))

    energy_T, forces_T = pl.pallas_call(
        mlff_kernel,
        out_shape=(
            jax.ShapeDtypeStruct((1, b_pad), jnp.float32),
            jax.ShapeDtypeStruct((F, b_pad), jnp.float32),
        ),
        grid_spec=pltpu.PrefetchScalarGridSpec(
            num_scalar_prefetch=0,
            grid=grid,
            in_specs=[
                pl.BlockSpec((F, tile_b), lambda i: (0, i)),   # x^T  (tiled on lanes)
                resident((32, 9)),                             # W1
                resident((32, 1)),                             # b1
                resident((16, 32)),                            # W2
                resident((16, 1)),                             # b2
                resident((16, 1)),                             # W3^T
                resident((1, 1)),                              # b3
            ],
            out_specs=(
                pl.BlockSpec((1, tile_b), lambda i: (0, i)),   # energy^T
                pl.BlockSpec((F, tile_b), lambda i: (0, i)),   # forces^T
            ),
        ),
        compiler_params=pltpu.CompilerParams(
            dimension_semantics=("parallel",),
            vmem_limit_bytes=32 * 1024 * 1024,
        ),
    )(
        xT,
        w1, b1.reshape(-1, 1),
        w2, b2.reshape(-1, 1),
        w3.T, b3.reshape(1, 1),
    )

    energy = energy_T[:, :B].T                                  # (B, 1)
    forces = forces_T[:, :B].T.reshape(batch_size, -1, 3)       # (B, 3, 3)
    return energy, forces


def _reference(x, params):
    """Pure-JAX reference (forward via jnp, forces via jax.grad) for validation."""
    w1, b1, w2, b2, w3, b3 = params
    B = x.shape[0] if x.ndim > 2 else 1
    x_flat = x.reshape(B, -1).astype(jnp.float32)

    def energy_sum(xf):
        h = jnp.maximum(xf @ w1.T + b1, 0.0)
        h = jnp.maximum(h @ w2.T + b2, 0.0)
        return jnp.sum(h @ w3.T + b3)

    h = jnp.maximum(x_flat @ w1.T + b1, 0.0)
    h = jnp.maximum(h @ w2.T + b2, 0.0)
    energy = h @ w3.T + b3
    forces = -jax.grad(energy_sum)(x_flat)
    return energy, forces.reshape(B, -1, 3)


if __name__ == "__main__":
    key = jax.random.PRNGKey(0)
    kx, kz, kp = jax.random.split(key, 3)

    # batch=2, 3 coordinates x 3 atoms (fc1 input dim = 9)
    x = jax.random.normal(kx, (2, 3, 3), dtype=jnp.float32)
    z = jax.random.randint(kz, (2, 3), 1, 10)   # atomic numbers (unused in forward)

    params = init_params(kp)

    energy, forces = toy_mlff_forward(x, z, params)
    energy = jax.block_until_ready(energy)
    forces = jax.block_until_ready(forces)

    e_ref, f_ref = _reference(x, params)
    assert energy.shape == (2, 1) and forces.shape == (2, 3, 3)
    assert jnp.allclose(energy, e_ref, atol=1e-5, rtol=1e-5)
    assert jnp.allclose(forces, f_ref, atol=1e-5, rtol=1e-5)

    print("KERNEL_OK")
</pallas_src>

<mosaic_0001>
module attributes {stable_mosaic.version = 11 : i64} {
  func.func @mlff_kernel(%arg0: i32, %arg1: memref<9x128xf32, #tpu.memory_space<vmem>>, %arg2: memref<32x9xf32, #tpu.memory_space<vmem>>, %arg3: memref<32x1xf32, #tpu.memory_space<vmem>>, %arg4: memref<16x32xf32, #tpu.memory_space<vmem>>, %arg5: memref<16x1xf32, #tpu.memory_space<vmem>>, %arg6: memref<16x1xf32, #tpu.memory_space<vmem>>, %arg7: memref<1x1xf32, #tpu.memory_space<vmem>>, %arg8: memref<1x128xf32, #tpu.memory_space<vmem>>, %arg9: memref<9x128xf32, #tpu.memory_space<vmem>>) attributes {dimension_semantics = [#tpu.dimension_semantics<parallel>], iteration_bounds = array<i64: 1>, scalar_prefetch = 0 : i64, scratch_operands = 0 : i64, tpu.core_type = #tpu.core_type<tc>, window_params = [{transform_indices = @transform_0, window_bounds = array<i64: 9, 128>}, {pipeline_mode = #tpu.pipeline_mode<synchronous>, transform_indices = @transform_1, window_bounds = array<i64: 32, 9>}, {pipeline_mode = #tpu.pipeline_mode<synchronous>, transform_indices = @transform_2, window_bounds = array<i64: 32, 1>}, {pipeline_mode = #tpu.pipeline_mode<synchronous>, transform_indices = @transform_3, window_bounds = array<i64: 16, 32>}, {pipeline_mode = #tpu.pipeline_mode<synchronous>, transform_indices = @transform_4, window_bounds = array<i64: 16, 1>}, {pipeline_mode = #tpu.pipeline_mode<synchronous>, transform_indices = @transform_5, window_bounds = array<i64: 16, 1>}, {pipeline_mode = #tpu.pipeline_mode<synchronous>, transform_indices = @transform_6, window_bounds = array<i64: 1, 1>}, {transform_indices = @transform_7, window_bounds = array<i64: 1, 128>}, {transform_indices = @transform_8, window_bounds = array<i64: 9, 128>}]} {
    %c0 = arith.constant 0 : index
    %c0_0 = arith.constant 0 : index
    %0 = vector.load %arg1[%c0, %c0_0] : memref<9x128xf32, #tpu.memory_space<vmem>>, vector<9x128xf32>
    %c0_1 = arith.constant 0 : index
    %c0_2 = arith.constant 0 : index
    %1 = vector.load %arg2[%c0_1, %c0_2] : memref<32x9xf32, #tpu.memory_space<vmem>>, vector<32x9xf32>
    %c0_3 = arith.constant 0 : index
    %c0_4 = arith.constant 0 : index
    %2 = vector.load %arg3[%c0_3, %c0_4] : memref<32x1xf32, #tpu.memory_space<vmem>>, vector<32x1xf32>
    %c0_5 = arith.constant 0 : index
    %c0_6 = arith.constant 0 : index
    %3 = vector.load %arg4[%c0_5, %c0_6] : memref<16x32xf32, #tpu.memory_space<vmem>>, vector<16x32xf32>
    %c0_7 = arith.constant 0 : index
    %c0_8 = arith.constant 0 : index
    %4 = vector.load %arg5[%c0_7, %c0_8] : memref<16x1xf32, #tpu.memory_space<vmem>>, vector<16x1xf32>
    %c0_9 = arith.constant 0 : index
    %c0_10 = arith.constant 0 : index
    %5 = vector.load %arg6[%c0_9, %c0_10] : memref<16x1xf32, #tpu.memory_space<vmem>>, vector<16x1xf32>
    %c0_11 = arith.constant 0 : index
    %c0_12 = arith.constant 0 : index
    %6 = vector.load %arg7[%c0_11, %c0_12] : memref<1x1xf32, #tpu.memory_space<vmem>>, vector<1x1xf32>
    %cst = arith.constant dense<0.000000e+00> : vector<32x128xf32>
    %7 = tpu.matmul %1, %0, %cst {dimension_numbers = #tpu.dot_dimension_numbers<[1], [0], [0], [1], [0, 0, 1, 1], [], []>} : vector<32x9xf32>, vector<9x128xf32>, vector<32x128xf32> -> vector<32x128xf32>
    %8 = vector.broadcast %2 : vector<32x1xf32> to vector<32x128xf32>
    %9 = arith.addf %7, %8 : vector<32x128xf32>
    %cst_13 = arith.constant 0.000000e+00 : f32
    %10 = vector.broadcast %cst_13 : f32 to vector<32x128xf32>
    %11 = arith.maximumf %9, %10 : vector<32x128xf32>
    %cst_14 = arith.constant dense<0.000000e+00> : vector<16x128xf32>
    %12 = tpu.matmul %3, %11, %cst_14 {dimension_numbers = #tpu.dot_dimension_numbers<[1], [0], [0], [1], [0, 0, 1, 1], [], []>} : vector<16x32xf32>, vector<32x128xf32>, vector<16x128xf32> -> vector<16x128xf32>
    %13 = vector.broadcast %4 : vector<16x1xf32> to vector<16x128xf32>
    %14 = arith.addf %12, %13 : vector<16x128xf32>
    %cst_15 = arith.constant 0.000000e+00 : f32
    %15 = vector.broadcast %cst_15 : f32 to vector<16x128xf32>
    %16 = arith.maximumf %14, %15 : vector<16x128xf32>
    %cst_16 = arith.constant dense<0.000000e+00> : vector<1x128xf32>
    %17 = tpu.matmul %5, %16, %cst_16 {dimension_numbers = #tpu.dot_dimension_numbers<[0], [0], [1], [1], [0, 1, 1, 1], [], []>} : vector<16x1xf32>, vector<16x128xf32>, vector<1x128xf32> -> vector<1x128xf32>
    %18 = vector.broadcast %6 : vector<1x1xf32> to vector<1x128xf32>
    %19 = arith.addf %17, %18 : vector<1x128xf32>
    %c0_17 = arith.constant 0 : index
    %c0_18 = arith.constant 0 : index
    %20 = vector.load %arg8[%c0_17, %c0_18] : memref<1x128xf32, #tpu.memory_space<vmem>>, vector<1x128xf32>
    tpu.vector_store %arg8[%c0_17, %c0_18], %19 {strides = array<i32>} : memref<1x128xf32, #tpu.memory_space<vmem>>, vector<1x128xf32>,
    %cst_19 = arith.constant 0.000000e+00 : f32
    %21 = vector.broadcast %cst_19 : f32 to vector<16x128xf32>
    %22 = arith.cmpf ogt, %14, %21 : vector<16x128xf32>
    %cst_20 = arith.constant 0.000000e+00 : f32
    %23 = vector.shape_cast %5 : vector<16x1xf32> to vector<16x1xf32>
    %24 = vector.broadcast %23 : vector<16x1xf32> to vector<16x128xf32>
    %25 = vector.broadcast %cst_20 : f32 to vector<16x128xf32>
    %26 = arith.select %22, %24, %25 : vector<16x128xi1>, vector<16x128xf32>
    %cst_21 = arith.constant 0.000000e+00 : f32
    %27 = vector.broadcast %cst_21 : f32 to vector<32x128xf32>
    %28 = arith.cmpf ogt, %9, %27 : vector<32x128xf32>
    %cst_22 = arith.constant dense<0.000000e+00> : vector<32x128xf32>
    %29 = tpu.matmul %3, %26, %cst_22 {dimension_numbers = #tpu.dot_dimension_numbers<[0], [0], [1], [1], [0, 1, 1, 1], [], []>} : vector<16x32xf32>, vector<16x128xf32>, vector<32x128xf32> -> vector<32x128xf32>
    %cst_23 = arith.constant 0.000000e+00 : f32
    %30 = vector.broadcast %cst_23 : f32 to vector<32x128xf32>
    %31 = arith.select %28, %29, %30 : vector<32x128xi1>, vector<32x128xf32>
    %cst_24 = arith.constant dense<0.000000e+00> : vector<9x128xf32>
    %32 = tpu.matmul %1, %31, %cst_24 {dimension_numbers = #tpu.dot_dimension_numbers<[0], [0], [1], [1], [0, 1, 1, 1], [], []>} : vector<32x9xf32>, vector<32x128xf32>, vector<9x128xf32> -> vector<9x128xf32>
    %cst_25 = arith.constant 0.000000e+00 : f32
    %33 = vector.broadcast %cst_25 : f32 to vector<9x128xf32>
    %34 = arith.subf %33, %32 : vector<9x128xf32>
    %c0_26 = arith.constant 0 : index
    %c0_27 = arith.constant 0 : index
    %35 = vector.load %arg9[%c0_26, %c0_27] : memref<9x128xf32, #tpu.memory_space<vmem>>, vector<9x128xf32>
    tpu.vector_store %arg9[%c0_26, %c0_27], %34 {strides = array<i32>} : memref<9x128xf32, #tpu.memory_space<vmem>>, vector<9x128xf32>,
    return
  }
  func.func @transform_0(%arg0: i32) -> (i32, i32) {
    %c0_i32 = arith.constant 0 : i32
    %c0_i32_0 = arith.constant 0 : i32
    return %c0_i32, %arg0 : i32, i32
  }
  func.func @transform_1(%arg0: i32) -> (i32, i32) {
    %c0_i32 = arith.constant 0 : i32
    %c0_i32_0 = arith.constant 0 : i32
    %c0_i32_1 = arith.constant 0 : i32
    return %c0_i32, %c0_i32_0 : i32, i32
  }
  func.func @transform_2(%arg0: i32) -> (i32, i32) {
    %c0_i32 = arith.constant 0 : i32
    %c0_i32_0 = arith.constant 0 : i32
    %c0_i32_1 = arith.constant 0 : i32
    return %c0_i32, %c0_i32_0 : i32, i32
  }
  func.func @transform_3(%arg0: i32) -> (i32, i32) {
    %c0_i32 = arith.constant 0 : i32
    %c0_i32_0 = arith.constant 0 : i32
    %c0_i32_1 = arith.constant 0 : i32
    return %c0_i32, %c0_i32_0 : i32, i32
  }
  func.func @transform_4(%arg0: i32) -> (i32, i32) {
    %c0_i32 = arith.constant 0 : i32
    %c0_i32_0 = arith.constant 0 : i32
    %c0_i32_1 = arith.constant 0 : i32
    return %c0_i32, %c0_i32_0 : i32, i32
  }
  func.func @transform_5(%arg0: i32) -> (i32, i32) {
    %c0_i32 = arith.constant 0 : i32
    %c0_i32_0 = arith.constant 0 : i32
    %c0_i32_1 = arith.constant 0 : i32
    return %c0_i32, %c0_i32_0 : i32, i32
  }
  func.func @transform_6(%arg0: i32) -> (i32, i32) {
    %c0_i32 = arith.constant 0 : i32
    %c0_i32_0 = arith.constant 0 : i32
    %c0_i32_1 = arith.constant 0 : i32
    return %c0_i32, %c0_i32_0 : i32, i32
  }
  func.func @transform_7(%arg0: i32) -> (i32, i32) {
    %c0_i32 = arith.constant 0 : i32
    %c0_i32_0 = arith.constant 0 : i32
    return %c0_i32, %arg0 : i32, i32
  }
  func.func @transform_8(%arg0: i32) -> (i32, i32) {
    %c0_i32 = arith.constant 0 : i32
    %c0_i32_0 = arith.constant 0 : i32
    return %c0_i32, %arg0 : i32, i32
  }
}

</mosaic_0001>

<llo_original>
// kernel: tpu_custom_call.1
$region0: #{tpu_custom_call.1}
  #allocation0 [shape = 'u32[]', space=smem, size = 0x4, offset = 0x4, fixed_abs, tag = 'smem constant byte address 0x4 - core index']
  #allocation1 [shape = 'u32[144,128]{1,0:T(1,128)}', space=vmem, size = 0x12000, scoped, tag = 'internal scratch']
  #allocation2 [shape = 'f32[1,1]{1,0:T(1,128)S(1)}', space=vmem, size = 0x200, scoped, tag = 'scoped memory for tpu_custom_call.1']
  %s0 = inlined_call_operand.vmem [shape: f32[9,128], index: 0, kind: input, shape index: {}]
  %s1 = inlined_call_operand.vmem [shape: f32[32,9], index: 1, kind: input, shape index: {}]
  %s2 = inlined_call_operand.vmem [shape: f32[32,1], index: 2, kind: input, shape index: {}]
  %s3 = inlined_call_operand.vmem [shape: f32[16,32], index: 3, kind: input, shape index: {}]
  %s4 = inlined_call_operand.vmem [shape: f32[16,1], index: 4, kind: input, shape index: {}]
  %s5 = inlined_call_operand.vmem [shape: f32[16,1], index: 5, kind: input, shape index: {}]
  %s6 = inlined_call_operand.<no memory space> [shape: f32[1,1], index: 6, kind: input, shape index: {}]
  %s7 = inlined_call_operand.hbm [shape: f32[1,128], index: 7, kind: output, shape index: {0}]
  %s8 = inlined_call_operand.hbm [shape: f32[9,128], index: 8, kind: output, shape index: {1}]
  %9 = xla_tuple %s7, %s8
  %s10 = sld [smem:[#allocation0]]
  $region46: #{tpu_custom_call.1} parent=0
    _
  %s12 = ssub.s32 1, %s10
  %s13 = scalar_select 0, %s12, %s10
  %v14 = vstv %s6
  %15 = vst [vmem:[#allocation2] sm:$0x1] %v14
  $region1: #{tpu_custom_call.1} parent=0
    #allocation3 [shape = 'u8[512]{0}', space=vmem, size = 0x400, scoped, tag = 'output window, operand 0, single buffered']
    #allocation4 [shape = 's32[1]{0}', space=sflag, size = 0x4, scoped, tag = 'scoped memory for tpu_custom_call.1']
    #allocation5 [shape = 'u8[8192]{0}', space=vmem, size = 0x2000, scoped, tag = 'output window, operand 1, single buffered']
    #allocation6 [shape = 's32[1]{0}', space=sflag, size = 0x4, scoped, tag = 'scoped memory for tpu_custom_call.1']
    %16 = vsyncpa [#allocation4], 0
    %17 = vsyncpa [#allocation6], 0
    // Predicated region
    $region2: #{tpu_custom_call.1} parent=1 // pred_check
      _
    $region3: #{tpu_custom_call.1} parent=1 // pred_check_branch
      %19 = sbr.rel (0) target = $region5
    $region4: #{tpu_custom_call.1} parent=1 // pred_region
      _
    $region5: #{tpu_custom_call.1} parent=1 // pred_fallthru
      _
    // Predicated region
    $region6: #{tpu_custom_call.1} parent=1 // pred_check
      _
    $region7: #{tpu_custom_call.1} parent=1 // pred_check_branch
      %21 = sbr.rel (0) target = $region9
    $region8: #{tpu_custom_call.1} parent=1 // pred_region
      _
    $region9: #{tpu_custom_call.1} parent=1 // pred_fallthru
      _
    // Predicated region
    $region10: #{tpu_custom_call.1} parent=1 // pred_check
      _
    $region11: #{tpu_custom_call.1} parent=1 // pred_check_branch
      %23 = sbr.rel (0) target = $region13
    $region12: #{tpu_custom_call.1} parent=1 // pred_region
      _
    $region13: #{tpu_custom_call.1} parent=1 // pred_fallthru
      _
    // Predicated region
    $region14: #{tpu_custom_call.1} parent=1 // pred_check
      _
    $region15: #{tpu_custom_call.1} parent=1 // pred_check_branch
      %25 = sbr.rel (0) target = $region17
    $region16: #{tpu_custom_call.1} parent=1 // pred_region
      _
    $region17: #{tpu_custom_call.1} parent=1 // pred_fallthru
      _
    // Predicated region
    $region18: #{tpu_custom_call.1} parent=1 // pred_check
      _
    $region19: #{tpu_custom_call.1} parent=1 // pred_check_branch
      %27 = sbr.rel (0) target = $region21
    $region20: #{tpu_custom_call.1} parent=1 // pred_region
      _
    $region21: #{tpu_custom_call.1} parent=1 // pred_fallthru
      _
    // Predicated region
    $region22: #{tpu_custom_call.1} parent=1 // pred_check
      _
    $region23: #{tpu_custom_call.1} parent=1 // pred_check_branch
      %29 = sbr.rel (0) target = $region25
    $region24: #{tpu_custom_call.1} parent=1 // pred_region
      _
    $region25: #{tpu_custom_call.1} parent=1 // pred_fallthru
      _
    // Predicated region
    $region26: #{tpu_custom_call.1} parent=1 // pred_check
      _
    $region27: #{tpu_custom_call.1} parent=1 // pred_check_branch
      %31 = sbr.rel (0) target = $region29
    $region28: #{tpu_custom_call.1} parent=1 // pred_region
      _
    $region29: #{tpu_custom_call.1} parent=1 // pred_fallthru
      _
    %v32 = vld [vmem:[%s0] sm:$0xff]
    %v33 = vld [vmem:[%s0 + $0x8] sm:$0x1]
    %v34 = vld [vmem:[%s1] sm:$0xff]
    %v35 = vld [vmem:[%s1 + $0x8] sm:$0xff]
    %v36 = vld [vmem:[%s1 + $0x10] sm:$0xff]
    %v37 = vld [vmem:[%s1 + $0x18] sm:$0xff]
    %v38 = vld [vmem:[%s2] sm:$0xff]
    %v39 = vld [vmem:[%s2 + $0x8] sm:$0xff]
    %v40 = vld [vmem:[%s2 + $0x10] sm:$0xff]
    %v41 = vld [vmem:[%s2 + $0x18] sm:$0xff]
    %v42 = vld [vmem:[%s3] sm:$0xff]
    %v43 = vld [vmem:[%s3 + $0x8] sm:$0xff]
    %v44 = vld [vmem:[%s4] sm:$0xff]
    %v45 = vld [vmem:[%s4 + $0x8] sm:$0xff]
    %v46 = vld [vmem:[%s5] sm:$0xff]
    %v47 = vld [vmem:[%s5 + $0x8] sm:$0xff]
    %v48 = vld [vmem:[#allocation2] sm:$0x1]
    %50 = vset.pattern.permute.xlu0 0
    %51 = vperm.xlu0 %50, %v38
    %v52 = vpop.permute.xlu0 %51
    %55 = vset.pattern.permute.xlu0 0
    %56 = vperm.xlu0 %55, %v39
    %v57 = vpop.permute.xlu0 %56
    %60 = vset.pattern.permute.xlu0 0
    %61 = vperm.xlu0 %60, %v40
    %v62 = vpop.permute.xlu0 %61
    %65 = vset.pattern.permute.xlu0 0
    %66 = vperm.xlu0 %65, %v41
    %v67 = vpop.permute.xlu0 %66
    %vm69 = vcmask 72704
    %v71 = vsel %vm69, %v34, 0
    %v74 = vsel %vm69, %v35, 0
    %v77 = vsel %vm69, %v36, 0
    %v80 = vsel %vm69, %v37, 0
    %vm82 = vcmask 1040384
    %v84 = vsel %vm82, %v33, 0
    %86 = vmatprep.subr.mxu0 0.0
    %87 = vmatpush1.msra.mxu0 %v32
    %88 = vmatprep.subr.mxu0 0.0
    %89 = vmatpush1.msra.mxu0 %v84
    %90 = vmatprep.subr.mxu0 0.0
    %91 = vmatpush1.msra.mxu0 0.0
    %92 = vmatprep.subr.mxu0 0.0
    %93 = vmatpush1.msra.mxu0 0.0
    %94 = vmatprep.subr.mxu0 0.0
    %95 = vmatpush1.msra.mxu0 0.0
    %96 = vmatprep.subr.mxu0 0.0
    %97 = vmatpush1.msra.mxu0 0.0
    %98 = vmatprep.subr.mxu0 0.0
    %99 = vmatpush1.msra.mxu0 0.0
    %100 = vmatprep.subr.mxu0 0.0
    %101 = vmatpush1.msra.mxu0 0.0
    %102 = vmatprep.subr.mxu0 0.0
    %103 = vmatpush1.msra.mxu0 0.0
    %104 = vmatprep.subr.mxu0 0.0
    %105 = vmatpush1.msra.mxu0 0.0
    %106 = vmatprep.subr.mxu0 0.0
    %107 = vmatpush1.msra.mxu0 0.0
    %108 = vmatprep.subr.mxu0 0.0
    %109 = vmatpush1.msra.mxu0 0.0
    %110 = vmatprep.subr.mxu0 0.0
    %111 = vmatpush1.msra.mxu0 0.0
    %112 = vmatprep.subr.mxu0 0.0
    %113 = vmatpush1.msra.mxu0 0.0
    %114 = vmatprep.subr.mxu0 0.0
    %115 = vmatpush1.msra.mxu0 0.0
    %116 = vmatprep.subr.mxu0 0.0
    %117 = vmatpush1.msra.mxu0 0.0
    %118 = vmatprep.subr.mxu0 0.0
    %119 = vmatpush1.msra.mxu0 0.0
    %120 = vmatprep.subr.mxu0 0.0
    %121 = vmatpush1.msra.mxu0 0.0
    %122 = vmatprep.subr.mxu0 0.0
    %123 = vmatpush1.msra.mxu0 0.0
    %124 = vmatprep.subr.mxu0 0.0
    %125 = vmatpush1.msra.mxu0 0.0
    %126 = vmatprep.subr.mxu0 0.0
    %127 = vmatpush1.msra.mxu0 0.0
    %128 = vmatprep.subr.mxu0 0.0
    %129 = vmatpush1.msra.mxu0 0.0
    %130 = vmatprep.subr.mxu0 0.0
    %131 = vmatpush1.msra.mxu0 0.0
    %132 = vmatprep.subr.mxu0 0.0
    %133 = vmatpush1.msra.mxu0 0.0
    %134 = vmatprep.subr.mxu0 0.0
    %135 = vmatpush1.msra.mxu0 0.0
    %136 = vmatprep.subr.mxu0 0.0
    %137 = vmatpush1.msra.mxu0 0.0
    %138 = vmatprep.subr.mxu0 0.0
    %139 = vmatpush1.msra.mxu0 0.0
    %140 = vmatprep.subr.mxu0 0.0
    %141 = vmatpush1.msra.mxu0 0.0
    %142 = vmatprep.subr.mxu0 0.0
    %143 = vmatpush1.msra.mxu0 0.0
    %144 = vmatprep.subr.mxu0 0.0
    %145 = vmatpush1.msra.mxu0 0.0
    %146 = vmatprep.subr.mxu0 0.0
    %147 = vmatpush1.msra.mxu0 0.0
    %148 = vmatprep.subr.mxu0 0.0
    %149 = vmatpush1.msra.mxu0 0.0
    %150 = vmatprep.mubr.f32.mxu0 0.0
    %151 = vmatmul.mubr.f32.gmra.mrb[0].mxu0 %v71
    %v152 = vpop.f32.mrb[0].mxu0
    %v153 = vadd.f32 %v52, %v152
    %v154 = vpop.f32.mrb[0].mxu0
    %155 = vmatprep.mubr.f32.mxu0 0.0
    %156 = vmatmul.mubr.f32.gmra.mrb[0].mxu0 %v74
    %v157 = vpop.f32.mrb[0].mxu0
    %v158 = vadd.f32 %v57, %v157
    %v159 = vpop.f32.mrb[0].mxu0
    %160 = vmatprep.mubr.f32.mxu0 0.0
    %161 = vmatmul.mubr.f32.gmra.mrb[0].mxu0 %v77
    %v162 = vpop.f32.mrb[0].mxu0
    %v163 = vadd.f32 %v62, %v162
    %v164 = vpop.f32.mrb[0].mxu0
    %165 = vmatprep.mubr.f32.mxu0 0.0
    %166 = vmatmul.mubr.f32.gmra.mrb[0].mxu0 %v80
    %v167 = vpop.f32.mrb[0].mxu0
    %v168 = vadd.f32 %v67, %v167
    %v169 = vpop.f32.mrb[0].mxu0
    %170 = vdwg.mxu0
    %v171 = vmax.f32 %v153, 0.0
    %v172 = vmax.f32 %v158, 0.0
    %v173 = vmax.f32 %v163, 0.0
    %v174 = vmax.f32 %v168, 0.0
    %176 = vset.pattern.permute.xlu0 0
    %177 = vperm.xlu0 %176, %v44
    %v178 = vpop.permute.xlu0 %177
    %181 = vset.pattern.permute.xlu0 0
    %182 = vperm.xlu0 %181, %v45
    %v183 = vpop.permute.xlu0 %182
    %vm185 = vcmask 261120
    %v187 = vsel %vm185, %v42, 0
    %v190 = vsel %vm185, %v43, 0
    %192 = vmatprep.subr.mxu0 0.0
    %193 = vmatpush1.msra.mxu0 %v171
    %194 = vmatprep.subr.mxu0 0.0
    %195 = vmatpush1.msra.mxu0 %v172
    %196 = vmatprep.subr.mxu0 0.0
    %197 = vmatpush1.msra.mxu0 %v173
    %198 = vmatprep.subr.mxu0 0.0
    %199 = vmatpush1.msra.mxu0 %v174
    %200 = vmatprep.subr.mxu0 0.0
    %201 = vmatpush1.msra.mxu0 0.0
    %202 = vmatprep.subr.mxu0 0.0
    %203 = vmatpush1.msra.mxu0 0.0
    %204 = vmatprep.subr.mxu0 0.0
    %205 = vmatpush1.msra.mxu0 0.0
    %206 = vmatprep.subr.mxu0 0.0
    %207 = vmatpush1.msra.mxu0 0.0
    %208 = vmatprep.subr.mxu0 0.0
    %209 = vmatpush1.msra.mxu0 0.0
    %210 = vmatprep.subr.mxu0 0.0
    %211 = vmatpush1.msra.mxu0 0.0
    %212 = vmatprep.subr.mxu0 0.0
    %213 = vmatpush1.msra.mxu0 0.0
    %214 = vmatprep.subr.mxu0 0.0
    %215 = vmatpush1.msra.mxu0 0.0
    %216 = vmatprep.subr.mxu0 0.0
    %217 = vmatpush1.msra.mxu0 0.0
    %218 = vmatprep.subr.mxu0 0.0
    %219 = vmatpush1.msra.mxu0 0.0
    %220 = vmatprep.subr.mxu0 0.0
    %221 = vmatpush1.msra.mxu0 0.0
    %222 = vmatprep.subr.mxu0 0.0
    %223 = vmatpush1.msra.mxu0 0.0
    %224 = vmatprep.subr.mxu0 0.0
    %225 = vmatpush1.msra.mxu0 0.0
    %226 = vmatprep.subr.mxu0 0.0
    %227 = vmatpush1.msra.mxu0 0.0
    %228 = vmatprep.subr.mxu0 0.0
    %229 = vmatpush1.msra.mxu0 0.0
    %230 = vmatprep.subr.mxu0 0.0
    %231 = vmatpush1.msra.mxu0 0.0
    %232 = vmatprep.subr.mxu0 0.0
    %233 = vmatpush1.msra.mxu0 0.0
    %234 = vmatprep.subr.mxu0 0.0
    %235 = vmatpush1.msra.mxu0 0.0
    %236 = vmatprep.subr.mxu0 0.0
    %237 = vmatpush1.msra.mxu0 0.0
    %238 = vmatprep.subr.mxu0 0.0
    %239 = vmatpush1.msra.mxu0 0.0
    %240 = vmatprep.subr.mxu0 0.0
    %241 = vmatpush1.msra.mxu0 0.0
    %242 = vmatprep.subr.mxu0 0.0
    %243 = vmatpush1.msra.mxu0 0.0
    %244 = vmatprep.subr.mxu0 0.0
    %245 = vmatpush1.msra.mxu0 0.0
    %246 = vmatprep.subr.mxu0 0.0
    %247 = vmatpush1.msra.mxu0 0.0
    %248 = vmatprep.subr.mxu0 0.0
    %249 = vmatpush1.msra.mxu0 0.0
    %250 = vmatprep.subr.mxu0 0.0
    %251 = vmatpush1.msra.mxu0 0.0
    %252 = vmatprep.subr.mxu0 0.0
    %253 = vmatpush1.msra.mxu0 0.0
    %254 = vmatprep.subr.mxu0 0.0
    %255 = vmatpush1.msra.mxu0 0.0
    %256 = vmatprep.mubr.f32.mxu0 0.0
    %257 = vmatmul.mubr.f32.gmra.mrb[0].mxu0 %v187
    %v258 = vpop.f32.mrb[0].mxu0
    %v259 = vadd.f32 %v178, %v258
    %v260 = vpop.f32.mrb[0].mxu0
    %261 = vmatprep.mubr.f32.mxu0 0.0
    %262 = vmatmul.mubr.f32.gmra.mrb[0].mxu0 %v190
    %v263 = vpop.f32.mrb[0].mxu0
    %v264 = vadd.f32 %v183, %v263
    %v265 = vpop.f32.mrb[0].mxu0
    %266 = vdwg.mxu0
    %v267 = vmax.f32 %v259, 0.0
    %v268 = vmax.f32 %v264, 0.0
    %270 = vset.pattern.permute.xlu0 0
    %271 = vperm.xlu0 %270, %v48
    %v272 = vpop.permute.xlu0 %271
    %v274 = vlaneseq
    %v275 = vshrl.u32 %v274, 7
    %v276 = vsub.s32 0, %v275
    %v277 = vrot.slane %v272, %v276
    %278 = vxpose.xlu0.b32.start [1/16] %v46, 128
    %279 = vxpose.xlu0.b32.cont [2/16] %v47, 128
    %280 = vxpose.xlu0.b32.cont [3/16] 0.0, 128
    %281 = vxpose.xlu0.b32.cont [4/16] 0.0, 128
    %282 = vxpose.xlu0.b32.cont [5/16] 0.0, 128
    %283 = vxpose.xlu0.b32.cont [6/16] 0.0, 128
    %284 = vxpose.xlu0.b32.cont [7/16] 0.0, 128
    %285 = vxpose.xlu0.b32.cont [8/16] 0.0, 128
    %286 = vxpose.xlu0.b32.cont [9/16] 0.0, 128
    %287 = vxpose.xlu0.b32.cont [10/16] 0.0, 128
    %288 = vxpose.xlu0.b32.cont [11/16] 0.0, 128
    %289 = vxpose.xlu0.b32.cont [12/16] 0.0, 128
    %290 = vxpose.xlu0.b32.cont [13/16] 0.0, 128
    %291 = vxpose.xlu0.b32.cont [14/16] 0.0, 128
    %292 = vxpose.xlu0.b32.cont [15/16] 0.0, 128
    %293 = vxpose.xlu0.b32.end [16/16] 0.0, 128
    %v294 = vpop.trf.xlu0
    %v295 = vpop.trf.xlu0
    %v296 = vpop.trf.xlu0
    %v297 = vpop.trf.xlu0
    %v298 = vpop.trf.xlu0
    %v299 = vpop.trf.xlu0
    %v300 = vpop.trf.xlu0
    %v301 = vpop.trf.xlu0
    %v302 = vpop.trf.xlu0
    %v303 = vpop.trf.xlu0
    %v304 = vpop.trf.xlu0
    %v305 = vpop.trf.xlu0
    %v306 = vpop.trf.xlu0
    %v307 = vpop.trf.xlu0
    %v308 = vpop.trf.xlu0
    %v309 = vpop.trf.xlu0
    %vm310 = vcmask 130048
    %v312 = vsel %vm310, %v294, 0
    %314 = vmatprep.subr.mxu0 0.0
    %315 = vmatpush1.msra.mxu0 %v267
    %316 = vmatprep.subr.mxu0 0.0
    %317 = vmatpush1.msra.mxu0 %v268
    %318 = vmatprep.subr.mxu0 0.0
    %319 = vmatpush1.msra.mxu0 0.0
    %320 = vmatprep.subr.mxu0 0.0
    %321 = vmatpush1.msra.mxu0 0.0
    %322 = vmatprep.subr.mxu0 0.0
    %323 = vmatpush1.msra.mxu0 0.0
    %324 = vmatprep.subr.mxu0 0.0
    %325 = vmatpush1.msra.mxu0 0.0
    %326 = vmatprep.subr.mxu0 0.0
    %327 = vmatpush1.msra.mxu0 0.0
    %328 = vmatprep.subr.mxu0 0.0
    %329 = vmatpush1.msra.mxu0 0.0
    %330 = vmatprep.subr.mxu0 0.0
    %331 = vmatpush1.msra.mxu0 0.0
    %332 = vmatprep.subr.mxu0 0.0
    %333 = vmatpush1.msra.mxu0 0.0
    %334 = vmatprep.subr.mxu0 0.0
    %335 = vmatpush1.msra.mxu0 0.0
    %336 = vmatprep.subr.mxu0 0.0
    %337 = vmatpush1.msra.mxu0 0.0
    %338 = vmatprep.subr.mxu0 0.0
    %339 = vmatpush1.msra.mxu0 0.0
    %340 = vmatprep.subr.mxu0 0.0
    %341 = vmatpush1.msra.mxu0 0.0
    %342 = vmatprep.subr.mxu0 0.0
    %343 = vmatpush1.msra.mxu0 0.0
    %344 = vmatprep.subr.mxu0 0.0
    %345 = vmatpush1.msra.mxu0 0.0
    %346 = vmatprep.subr.mxu0 0.0
    %347 = vmatpush1.msra.mxu0 0.0
    %348 = vmatprep.subr.mxu0 0.0
    %349 = vmatpush1.msra.mxu0 0.0
    %350 = vmatprep.subr.mxu0 0.0
    %351 = vmatpush1.msra.mxu0 0.0
    %352 = vmatprep.subr.mxu0 0.0
    %353 = vmatpush1.msra.mxu0 0.0
    %354 = vmatprep.subr.mxu0 0.0
    %355 = vmatpush1.msra.mxu0 0.0
    %356 = vmatprep.subr.mxu0 0.0
    %357 = vmatpush1.msra.mxu0 0.0
    %358 = vmatprep.subr.mxu0 0.0
    %359 = vmatpush1.msra.mxu0 0.0
    %360 = vmatprep.subr.mxu0 0.0
    %361 = vmatpush1.msra.mxu0 0.0
    %362 = vmatprep.subr.mxu0 0.0
    %363 = vmatpush1.msra.mxu0 0.0
    %364 = vmatprep.subr.mxu0 0.0
    %365 = vmatpush1.msra.mxu0 0.0
    %366 = vmatprep.subr.mxu0 0.0
    %367 = vmatpush1.msra.mxu0 0.0
    %368 = vmatprep.subr.mxu0 0.0
    %369 = vmatpush1.msra.mxu0 0.0
    %370 = vmatprep.subr.mxu0 0.0
    %371 = vmatpush1.msra.mxu0 0.0
    %372 = vmatprep.subr.mxu0 0.0
    %373 = vmatpush1.msra.mxu0 0.0
    %374 = vmatprep.subr.mxu0 0.0
    %375 = vmatpush1.msra.mxu0 0.0
    %376 = vmatprep.subr.mxu0 0.0
    %377 = vmatpush1.msra.mxu0 0.0
    %378 = vmatprep.mubr.f32.mxu0 0.0
    %379 = vmatmul.mubr.f32.gmra.mrb[0].mxu0 %v312
    %v380 = vpop.f32.mrb[0].mxu0
    %v381 = vadd.f32 %v277, %v380
    %v382 = vpop.f32.mrb[0].mxu0
    %383 = vdwg.mxu0
    %384 = vst [vmem:[#allocation3] sm:$0x1] %v381
    %vm385 = vcmp.gt.f32.partialorder %v259, 0.0
    %vm386 = vcmp.gt.f32.partialorder %v264, 0.0
    %388 = vset.pattern.permute.xlu0 0
    %389 = vperm.xlu0 %388, %v46
    %v390 = vpop.permute.xlu0 %389
    %393 = vset.pattern.permute.xlu0 0
    %394 = vperm.xlu0 %393, %v47
    %v395 = vpop.permute.xlu0 %394
    %v397 = vsel %vm385, %v390, 0.0
    %v398 = vsel %vm386, %v395, 0.0
    %vm399 = vcmp.gt.f32.partialorder %v153, 0.0
    %vm400 = vcmp.gt.f32.partialorder %v158, 0.0
    %vm401 = vcmp.gt.f32.partialorder %v163, 0.0
    %vm402 = vcmp.gt.f32.partialorder %v168, 0.0
    %403 = vxpose.xlu0.b32.start [1/16] %v42, 128
    %404 = vxpose.xlu0.b32.cont [2/16] %v43, 128
    %405 = vxpose.xlu0.b32.cont [3/16] 0.0, 128
    %406 = vxpose.xlu0.b32.cont [4/16] 0.0, 128
    %407 = vxpose.xlu0.b32.cont [5/16] 0.0, 128
    %408 = vxpose.xlu0.b32.cont [6/16] 0.0, 128
    %409 = vxpose.xlu0.b32.cont [7/16] 0.0, 128
    %410 = vxpose.xlu0.b32.cont [8/16] 0.0, 128
    %411 = vxpose.xlu0.b32.cont [9/16] 0.0, 128
    %412 = vxpose.xlu0.b32.cont [10/16] 0.0, 128
    %413 = vxpose.xlu0.b32.cont [11/16] 0.0, 128
    %414 = vxpose.xlu0.b32.cont [12/16] 0.0, 128
    %415 = vxpose.xlu0.b32.cont [13/16] 0.0, 128
    %416 = vxpose.xlu0.b32.cont [14/16] 0.0, 128
    %417 = vxpose.xlu0.b32.cont [15/16] 0.0, 128
    %418 = vxpose.xlu0.b32.end [16/16] 0.0, 128
    %v419 = vpop.trf.xlu0
    %v420 = vpop.trf.xlu0
    %v421 = vpop.trf.xlu0
    %v422 = vpop.trf.xlu0
    %v423 = vpop.trf.xlu0
    %v424 = vpop.trf.xlu0
    %v425 = vpop.trf.xlu0
    %v426 = vpop.trf.xlu0
    %v427 = vpop.trf.xlu0
    %v428 = vpop.trf.xlu0
    %v429 = vpop.trf.xlu0
    %v430 = vpop.trf.xlu0
    %v431 = vpop.trf.xlu0
    %v432 = vpop.trf.xlu0
    %v433 = vpop.trf.xlu0
    %v434 = vpop.trf.xlu0
    %v436 = vsel %vm310, %v419, 0
    %v439 = vsel %vm310, %v420, 0
    %v442 = vsel %vm310, %v421, 0
    %v445 = vsel %vm310, %v422, 0
    %447 = vmatprep.subr.mxu0 0.0
    %448 = vmatpush1.msra.mxu0 %v397
    %449 = vmatprep.subr.mxu0 0.0
    %450 = vmatpush1.msra.mxu0 %v398
    %451 = vmatprep.subr.mxu0 0.0
    %452 = vmatpush1.msra.mxu0 0.0
    %453 = vmatprep.subr.mxu0 0.0
    %454 = vmatpush1.msra.mxu0 0.0
    %455 = vmatprep.subr.mxu0 0.0
    %456 = vmatpush1.msra.mxu0 0.0
    %457 = vmatprep.subr.mxu0 0.0
    %458 = vmatpush1.msra.mxu0 0.0
    %459 = vmatprep.subr.mxu0 0.0
    %460 = vmatpush1.msra.mxu0 0.0
    %461 = vmatprep.subr.mxu0 0.0
    %462 = vmatpush1.msra.mxu0 0.0
    %463 = vmatprep.subr.mxu0 0.0
    %464 = vmatpush1.msra.mxu0 0.0
    %465 = vmatprep.subr.mxu0 0.0
    %466 = vmatpush1.msra.mxu0 0.0
    %467 = vmatprep.subr.mxu0 0.0
    %468 = vmatpush1.msra.mxu0 0.0
    %469 = vmatprep.subr.mxu0 0.0
    %470 = vmatpush1.msra.mxu0 0.0
    %471 = vmatprep.subr.mxu0 0.0
    %472 = vmatpush1.msra.mxu0 0.0
    %473 = vmatprep.subr.mxu0 0.0
    %474 = vmatpush1.msra.mxu0 0.0
    %475 = vmatprep.subr.mxu0 0.0
    %476 = vmatpush1.msra.mxu0 0.0
    %477 = vmatprep.subr.mxu0 0.0
    %478 = vmatpush1.msra.mxu0 0.0
    %479 = vmatprep.subr.mxu0 0.0
    %480 = vmatpush1.msra.mxu0 0.0
    %481 = vmatprep.subr.mxu0 0.0
    %482 = vmatpush1.msra.mxu0 0.0
    %483 = vmatprep.subr.mxu0 0.0
    %484 = vmatpush1.msra.mxu0 0.0
    %485 = vmatprep.subr.mxu0 0.0
    %486 = vmatpush1.msra.mxu0 0.0
    %487 = vmatprep.subr.mxu0 0.0
    %488 = vmatpush1.msra.mxu0 0.0
    %489 = vmatprep.subr.mxu0 0.0
    %490 = vmatpush1.msra.mxu0 0.0
    %491 = vmatprep.subr.mxu0 0.0
    %492 = vmatpush1.msra.mxu0 0.0
    %493 = vmatprep.subr.mxu0 0.0
    %494 = vmatpush1.msra.mxu0 0.0
    %495 = vmatprep.subr.mxu0 0.0
    %496 = vmatpush1.msra.mxu0 0.0
    %497 = vmatprep.subr.mxu0 0.0
    %498 = vmatpush1.msra.mxu0 0.0
    %499 = vmatprep.subr.mxu0 0.0
    %500 = vmatpush1.msra.mxu0 0.0
    %501 = vmatprep.subr.mxu0 0.0
    %502 = vmatpush1.msra.mxu0 0.0
    %503 = vmatprep.subr.mxu0 0.0
    %504 = vmatpush1.msra.mxu0 0.0
    %505 = vmatprep.subr.mxu0 0.0
    %506 = vmatpush1.msra.mxu0 0.0
    %507 = vmatprep.subr.mxu0 0.0
    %508 = vmatpush1.msra.mxu0 0.0
    %509 = vmatprep.subr.mxu0 0.0
    %510 = vmatpush1.msra.mxu0 0.0
    %511 = vmatprep.mubr.f32.mxu0 0.0
    %512 = vmatmul.mubr.f32.gmra.mrb[0].mxu0 %v436
    %v513 = vpop.f32.mrb[0].mxu0
    %v514 = vadd.f32 0.0, %v513
    %v515 = vpop.f32.mrb[0].mxu0
    %516 = vmatprep.mubr.f32.mxu0 0.0
    %517 = vmatmul.mubr.f32.gmra.mrb[0].mxu0 %v439
    %v518 = vpop.f32.mrb[0].mxu0
    %v519 = vadd.f32 0.0, %v518
    %v520 = vpop.f32.mrb[0].mxu0
    %521 = vmatprep.mubr.f32.mxu0 0.0
    %522 = vmatmul.mubr.f32.gmra.mrb[0].mxu0 %v442
    %v523 = vpop.f32.mrb[0].mxu0
    %v524 = vadd.f32 0.0, %v523
    %v525 = vpop.f32.mrb[0].mxu0
    %526 = vmatprep.mubr.f32.mxu0 0.0
    %527 = vmatmul.mubr.f32.gmra.mrb[0].mxu0 %v445
    %v528 = vpop.f32.mrb[0].mxu0
    %v529 = vadd.f32 0.0, %v528
    %v530 = vpop.f32.mrb[0].mxu0
    %531 = vdwg.mxu0
    %v532 = vsel %vm399, %v514, 0.0
    %v533 = vsel %vm400, %v519, 0.0
    %v534 = vsel %vm401, %v524, 0.0
    %v535 = vsel %vm402, %v529, 0.0
    %536 = vxpose.xlu0.b32.start [1/16] %v34, 128
    %537 = vxpose.xlu0.b32.cont [2/16] %v35, 128
    %538 = vxpose.xlu0.b32.cont [3/16] %v36, 128
    %539 = vxpose.xlu0.b32.cont [4/16] %v37, 128
    %540 = vxpose.xlu0.b32.cont [5/16] 0.0, 128
    %541 = vxpose.xlu0.b32.cont [6/16] 0.0, 128
    %542 = vxpose.xlu0.b32.cont [7/16] 0.0, 128
    %543 = vxpose.xlu0.b32.cont [8/16] 0.0, 128
    %544 = vxpose.xlu0.b32.cont [9/16] 0.0, 128
    %545 = vxpose.xlu0.b32.cont [10/16] 0.0, 128
    %546 = vxpose.xlu0.b32.cont [11/16] 0.0, 128
    %547 = vxpose.xlu0.b32.cont [12/16] 0.0, 128
    %548 = vxpose.xlu0.b32.cont [13/16] 0.0, 128
    %549 = vxpose.xlu0.b32.cont [14/16] 0.0, 128
    %550 = vxpose.xlu0.b32.cont [15/16] 0.0, 128
    %551 = vxpose.xlu0.b32.end [16/16] 0.0, 128
    %v552 = vpop.trf.xlu0
    %v553 = vpop.trf.xlu0
    %v554 = vpop.trf.xlu0
    %v555 = vpop.trf.xlu0
    %v556 = vpop.trf.xlu0
    %v557 = vpop.trf.xlu0
    %v558 = vpop.trf.xlu0
    %v559 = vpop.trf.xlu0
    %v560 = vpop.trf.xlu0
    %v561 = vpop.trf.xlu0
    %v562 = vpop.trf.xlu0
    %v563 = vpop.trf.xlu0
    %v564 = vpop.trf.xlu0
    %v565 = vpop.trf.xlu0
    %v566 = vpop.trf.xlu0
    %v567 = vpop.trf.xlu0
    %v569 = vsel %vm185, %v552, 0
    %v572 = vsel %vm185, %v553, 0
    %574 = vmatprep.subr.mxu0 0.0
    %575 = vmatpush1.msra.mxu0 %v532
    %576 = vmatprep.subr.mxu0 0.0
    %577 = vmatpush1.msra.mxu0 %v533
    %578 = vmatprep.subr.mxu0 0.0
    %579 = vmatpush1.msra.mxu0 %v534
    %580 = vmatprep.subr.mxu0 0.0
    %581 = vmatpush1.msra.mxu0 %v535
    %582 = vmatprep.subr.mxu0 0.0
    %583 = vmatpush1.msra.mxu0 0.0
    %584 = vmatprep.subr.mxu0 0.0
    %585 = vmatpush1.msra.mxu0 0.0
    %586 = vmatprep.subr.mxu0 0.0
    %587 = vmatpush1.msra.mxu0 0.0
    %588 = vmatprep.subr.mxu0 0.0
    %589 = vmatpush1.msra.mxu0 0.0
    %590 = vmatprep.subr.mxu0 0.0
    %591 = vmatpush1.msra.mxu0 0.0
    %592 = vmatprep.subr.mxu0 0.0
    %593 = vmatpush1.msra.mxu0 0.0
    %594 = vmatprep.subr.mxu0 0.0
    %595 = vmatpush1.msra.mxu0 0.0
    %596 = vmatprep.subr.mxu0 0.0
    %597 = vmatpush1.msra.mxu0 0.0
    %598 = vmatprep.subr.mxu0 0.0
    %599 = vmatpush1.msra.mxu0 0.0
    %600 = vmatprep.subr.mxu0 0.0
    %601 = vmatpush1.msra.mxu0 0.0
    %602 = vmatprep.subr.mxu0 0.0
    %603 = vmatpush1.msra.mxu0 0.0
    %604 = vmatprep.subr.mxu0 0.0
    %605 = vmatpush1.msra.mxu0 0.0
    %606 = vmatprep.subr.mxu0 0.0
    %607 = vmatpush1.msra.mxu0 0.0
    %608 = vmatprep.subr.mxu0 0.0
    %609 = vmatpush1.msra.mxu0 0.0
    %610 = vmatprep.subr.mxu0 0.0
    %611 = vmatpush1.msra.mxu0 0.0
    %612 = vmatprep.subr.mxu0 0.0
    %613 = vmatpush1.msra.mxu0 0.0
    %614 = vmatprep.subr.mxu0 0.0
    %615 = vmatpush1.msra.mxu0 0.0
    %616 = vmatprep.subr.mxu0 0.0
    %617 = vmatpush1.msra.mxu0 0.0
    %618 = vmatprep.subr.mxu0 0.0
    %619 = vmatpush1.msra.mxu0 0.0
    %620 = vmatprep.subr.mxu0 0.0
    %621 = vmatpush1.msra.mxu0 0.0
    %622 = vmatprep.subr.mxu0 0.0
    %623 = vmatpush1.msra.mxu0 0.0
    %624 = vmatprep.subr.mxu0 0.0
    %625 = vmatpush1.msra.mxu0 0.0
    %626 = vmatprep.subr.mxu0 0.0
    %627 = vmatpush1.msra.mxu0 0.0
    %628 = vmatprep.subr.mxu0 0.0
    %629 = vmatpush1.msra.mxu0 0.0
    %630 = vmatprep.subr.mxu0 0.0
    %631 = vmatpush1.msra.mxu0 0.0
    %632 = vmatprep.subr.mxu0 0.0
    %633 = vmatpush1.msra.mxu0 0.0
    %634 = vmatprep.subr.mxu0 0.0
    %635 = vmatpush1.msra.mxu0 0.0
    %636 = vmatprep.subr.mxu0 0.0
    %637 = vmatpush1.msra.mxu0 0.0
    %638 = vmatprep.mubr.f32.mxu0 0.0
    %639 = vmatmul.mubr.f32.gmra.mrb[0].mxu0 %v569
    %v640 = vpop.f32.mrb[0].mxu0
    %v641 = vadd.f32 0.0, %v640
    %v642 = vpop.f32.mrb[0].mxu0
    %643 = vmatprep.mubr.f32.mxu0 0.0
    %644 = vmatmul.mubr.f32.gmra.mrb[0].mxu0 %v572
    %v645 = vpop.f32.mrb[0].mxu0
    %v646 = vadd.f32 0.0, %v645
    %v647 = vpop.f32.mrb[0].mxu0
    %648 = vdwg.mxu0
    %v649 = vsub.f32 0.0, %v641
    %v650 = vsub.f32 0.0, %v646
    %651 = vst [vmem:[#allocation5] sm:$0xff] %v649
    %652 = vst [vmem:[#allocation5 + $0x8] sm:$0x1] %v650
    // Predicated region
    $region30: #{tpu_custom_call.1} parent=1 // pred_check
      _
    $region31: #{tpu_custom_call.1} parent=1 // pred_check_branch
      %654 = sbr.rel (0) target = $region33
    $region32: #{tpu_custom_call.1} parent=1 // pred_region
      %s656 = ssub.s32 16, 16
      %657 = vsyncadd [#allocation4], %s656
      %s659 = sshll.u32 [#allocation3], 4
      %s660 = int_to_ptr.vmem [resolvable:$true] %s659
      %662 = dma.vmem_to_hbm [thread:$0]  %s660, 16, %s7, [#allocation4]
    $region33: #{tpu_custom_call.1} parent=1 // pred_fallthru
      _
    // Predicated region
    $region34: #{tpu_custom_call.1} parent=1 // pred_check
      _
    $region35: #{tpu_custom_call.1} parent=1 // pred_check_branch
      %664 = sbr.rel (0) target = $region37
    $region36: #{tpu_custom_call.1} parent=1 // pred_region
      %s666 = ssub.s32 256, 256
      %667 = vsyncadd [#allocation6], %s666
      %s668 = sshll.u32 [#allocation5], 4
      %s669 = int_to_ptr.vmem [resolvable:$true] %s668
      %674 = dma.vmem_to_hbm [thread:$0]  %s669, 256, %s8, [#allocation6], 128, 128, 8
    $region37: #{tpu_custom_call.1} parent=1 // pred_fallthru
      _
    // Predicated region
    $region38: #{tpu_custom_call.1} parent=1 // pred_check
      _
    $region39: #{tpu_custom_call.1} parent=1 // pred_check_branch
      %676 = sbr.rel (0) target = $region41
    $region40: #{tpu_custom_call.1} parent=1 // pred_region
      %677 = dma.done [#allocation4], 16
    $region41: #{tpu_custom_call.1} parent=1 // pred_fallthru
      _
    // Predicated region
    $region42: #{tpu_custom_call.1} parent=1 // pred_check
      _
    $region43: #{tpu_custom_call.1} parent=1 // pred_check_branch
      %679 = sbr.rel (0) target = $region45
    $region44: #{tpu_custom_call.1} parent=1 // pred_region
      %680 = dma.done [#allocation6], 256
    $region45: #{tpu_custom_call.1} parent=1 // pred_fallthru
      _
    %681 = vsyncpa [#allocation4], 1
    %682 = vsyncpa [#allocation6], 1

</llo_original>
